<compile_context>
chip_gen: v6e
topology: v6e:2x2x1
jax: 0.10.0
libtpu: 0.0.40
codegen_flags: <defaults>
</compile_context>

<pallas_src>
import jax
import jax.numpy as jnp
from jax.experimental import pallas as pl
from jax.experimental.pallas import tpu as pltpu


def _sublane_multiple(itemsize: int) -> int:
    # Rows per vreg: 8 for 32-bit, 16 for 16-bit, 32 for 8-bit dtypes.
    return max(8, 32 // itemsize)


def _round_up(x: int, m: int) -> int:
    return -(-x // m) * m


def _pick_tile(d_seq_len: int, ds: int, bc: int, itemsize: int):
    """Pick td = output rows per block and the resulting grid depth."""
    sub = _sublane_multiple(itemsize)
    # (a) ~3 MiB of input per block: large enough to sit near the HBM roofline,
    #     small enough that double-buffered in+out plus f32 temps stay far below
    #     VMEM limits on every chip (v7x: 64 MiB physical per TensorCore).
    target_in_bytes = 3 * 1024 * 1024
    td_mem = max(sub, ((target_in_bytes // (ds * bc * itemsize)) // sub) * sub)
    # (b) at least ~8 grid steps when the sequence allows it so the pipeline has
    #     something to overlap and the v7x megacore can shard the grid axis.
    min_blocks = 8
    td_depth = max(sub, _round_up(pl.cdiv(d_seq_len, min_blocks), sub))
    # (c) never larger than needed to cover the whole output once.
    td_full = _round_up(d_seq_len, sub)
    td = min(td_mem, td_depth, td_full)
    num_blocks = pl.cdiv(d_seq_len, td)
    return td, num_blocks


def _make_lane_kernel(ds: int, bc: int):
    """seq_len % ds == 0 path: input block is (td, ds*bc); the ds terms are
    contiguous lane slices [:, k*bc:(k+1)*bc] (no strided sublane gathers)."""

    def kernel(w_ref, x_ref, o_ref):
        # w_ref: SMEM (ds,) f32 = softmax(bias); x_ref: VMEM (td, ds*bc);
        # o_ref: VMEM (td, bc).  Accumulate in f32, init with the k=0 term.
        acc = w_ref[0] * x_ref[:, 0:bc].astype(jnp.float32)
        for k in range(1, ds):
            acc = acc + w_ref[k] * x_ref[:, k * bc:(k + 1) * bc].astype(jnp.float32)
        o_ref[...] = acc.astype(o_ref.dtype)

    return kernel


def _make_strided_kernel(seq_len: int, d_seq_len: int, ds: int, td: int,
                         num_blocks: int):
    """seq_len % ds != 0 path: input block is (td*ds, bc) cut from the *unpadded*
    (seq_len, bc) array; the ds terms are sublane-strided slices.

    Correctness invariant (keep coupled to the tiling math in _pick_tile):
    rows of the last input block with global index >= seq_len are left
    unspecified by the pipeline DMA.  Because pad < ds, such rows can only feed
    output rows >= t_last; rows > t_last are clipped by the output BlockSpec
    writeback and row t_last is fully recomputed below, so no garbage ever
    reaches HBM."""
    block_rows = td * ds
    base = (num_blocks - 1) * block_rows                # first row of last block
    t_last = (d_seq_len - 1) - (num_blocks - 1) * td    # local last output row
    last_local = (seq_len - 1) - base                   # local row of last frame
    assert 0 <= t_last < td and 0 <= last_local < block_rows

    def kernel(w_ref, x_ref, o_ref):
        # w_ref: SMEM (ds,) f32; x_ref: VMEM (td*ds, bc); o_ref: VMEM (td, bc).
        acc = w_ref[0] * x_ref[pl.ds(0, td, stride=ds), :].astype(jnp.float32)
        for k in range(1, ds):
            xk = x_ref[pl.ds(k, td, stride=ds), :].astype(jnp.float32)
            acc = acc + w_ref[k] * xk
        o_ref[...] = acc.astype(o_ref.dtype)

        # Ragged tail: recompute the last output row, replacing the missing
        # frames with the last valid frame (all indices are static ints).
        @pl.when(pl.program_id(0) == num_blocks - 1)
        def _fix_tail():
            def term(k):
                src_local = t_last * ds + k
                if base + src_local >= seq_len:          # static Python condition
                    src_local = last_local
                return w_ref[k] * x_ref[pl.ds(src_local, 1), :].astype(jnp.float32)

            fix = term(0)
            for k in range(1, ds):
                fix = fix + term(k)
            o_ref[pl.ds(t_last, 1), :] = fix.astype(o_ref.dtype)

    return kernel


def simple_downsample(src: jax.Array, bias: jax.Array, downsample: int) -> jax.Array:
    """Pallas equivalent of SimpleDownsample.forward."""
    seq_len, batch, channels = src.shape
    ds = int(downsample)
    d_seq_len = (seq_len + ds - 1) // ds
    bc = batch * channels
    itemsize = jnp.dtype(src.dtype).itemsize

    # Tiny softmax over the (ds,) bias parameter (plain-JAX glue).
    weights = jax.nn.softmax(bias.astype(jnp.float32))

    td, num_blocks = _pick_tile(d_seq_len, ds, bc, itemsize)

    # VMEM accounting: double-buffered input + output blocks plus the f32
    # accumulator / cast temporaries the compiler materialises in VMEM.
    block_in = td * ds * bc * itemsize
    block_out = td * bc * itemsize
    est_vmem = 2 * block_in + 2 * block_out + 3 * td * bc * 4
    vmem_limit = int(min(48 << 20, max(32 << 20, 2 * est_vmem)))

    cost = pl.CostEstimate(
        flops=2 * ds * d_seq_len * bc,
        transcendentals=0,
        bytes_accessed=(seq_len + d_seq_len) * bc * itemsize,
    )
    compiler_params = pltpu.CompilerParams(
        dimension_semantics=("parallel",),
        vmem_limit_bytes=vmem_limit,
    )
    out_shape = jax.ShapeDtypeStruct((d_seq_len, bc), src.dtype)
    w_spec = pl.BlockSpec(memory_space=pltpu.MemorySpace.SMEM)
    # Lane-dense output stores require bc % 128 == 0 (unmasked vst); odd bc
    # still works, just with masked stores (we do not pad channels to avoid an
    # extra HBM copy in the wrapper).
    out_spec = pl.BlockSpec((td, bc), lambda i: (i, 0))

    if seq_len % ds == 0:
        # Fast path: free contiguous reshape folds the ds frames of each group
        # into the lane axis; in-kernel slices are contiguous lane windows.
        x2d = src.reshape(d_seq_len, ds * bc)
        out2d = pl.pallas_call(
            _make_lane_kernel(ds, bc),
            out_shape=out_shape,
            grid=(num_blocks,),
            in_specs=[w_spec, pl.BlockSpec((td, ds * bc), lambda i: (i, 0))],
            out_specs=out_spec,
            compiler_params=compiler_params,
            cost_estimate=cost,
        )(weights, x2d)
    else:
        # General path: stream the unpadded rows; sublane-strided slices do the
        # ds-way gather in VMEM and the ragged tail is fixed in-kernel (no HBM
        # padding copy).
        x2d = src.reshape(seq_len, bc)
        out2d = pl.pallas_call(
            _make_strided_kernel(seq_len, d_seq_len, ds, td, num_blocks),
            out_shape=out_shape,
            grid=(num_blocks,),
            in_specs=[w_spec, pl.BlockSpec((td * ds, bc), lambda i: (i, 0))],
            out_specs=out_spec,
            compiler_params=compiler_params,
            cost_estimate=cost,
        )(weights, x2d)

    return out2d.reshape(d_seq_len, batch, channels)


def _reference_downsample(src, bias, ds):
    """Pure-JAX reference matching the PyTorch forward exactly."""
    seq_len, batch, channels = src.shape
    d_seq_len = (seq_len + ds - 1) // ds
    pad = d_seq_len * ds - seq_len
    src_extra = jnp.broadcast_to(src[-1:], (pad, batch, channels))
    srcp = jnp.concatenate([src, src_extra], axis=0)
    srcp = srcp.reshape(d_seq_len, ds, batch, channels)
    w = jax.nn.softmax(bias.astype(jnp.float32))
    return (srcp.astype(jnp.float32) * w[None, :, None, None]).sum(axis=1).astype(src.dtype)


if __name__ == "__main__":
    key = jax.random.PRNGKey(0)
    k1, k2, k3 = jax.random.split(key, 3)
    downsample = 4
    batch, channels = 2, 64          # batch*channels = 128 -> lane-dense output

    # nn.Parameter(torch.zeros(downsample)) in the module; small deterministic
    # non-zero values so the weighted sum is non-trivial.
    bias = 0.1 * jax.random.normal(k2, (downsample,), dtype=jnp.float32)

    # 1) seq_len not divisible by ds -> strided path with in-kernel tail fix.
    seq_len = 30
    src = jax.random.normal(k1, (seq_len, batch, channels), dtype=jnp.float32)
    out = jax.block_until_ready(simple_downsample(src, bias, downsample))
    ref = _reference_downsample(src, bias, downsample)
    assert out.shape == ((seq_len + downsample - 1) // downsample, batch, channels)
    assert jnp.allclose(out, ref, atol=1e-5, rtol=1e-5), "mismatch (ragged path)"

    # 2) seq_len divisible by ds -> lane-sliced fast path.
    seq_len2 = 32
    src2 = jax.random.normal(k3, (seq_len2, batch, channels), dtype=jnp.float32)
    out2 = jax.block_until_ready(simple_downsample(src2, bias, downsample))
    ref2 = _reference_downsample(src2, bias, downsample)
    assert out2.shape == (seq_len2 // downsample, batch, channels)
    assert jnp.allclose(out2, ref2, atol=1e-5, rtol=1e-5), "mismatch (lane path)"

    print("KERNEL_OK")
</pallas_src>

<mosaic_0001>
module attributes {stable_mosaic.version = 11 : i64} {
  func.func @kernel(%arg0: i32, %arg1: memref<4xf32, #tpu.memory_space<smem>>, %arg2: memref<32x128xf32, #tpu.memory_space<vmem>>, %arg3: memref<8x128xf32, #tpu.memory_space<vmem>>) attributes {dimension_semantics = [#tpu.dimension_semantics<parallel>], iteration_bounds = array<i64: 1>, scalar_prefetch = 0 : i64, scratch_operands = 0 : i64, tpu.core_type = #tpu.core_type<tc>, window_params = [{transform_indices = @transform_0, window_bounds = array<i64: 4>}, {transform_indices = @transform_1, window_bounds = array<i64: 32, 128>}, {transform_indices = @transform_2, window_bounds = array<i64: 8, 128>}]} {
    %c0 = arith.constant 0 : index
    %0 = memref.load %arg1[%c0] : memref<4xf32, #tpu.memory_space<smem>>
    %c0_0 = arith.constant 0 : index
    %c0_1 = arith.constant 0 : index
    %1 = tpu.strided_load %arg2[%c0_0, %c0_1] {strides = array<i32: 4, 1>} : memref<32x128xf32, #tpu.memory_space<vmem>>, vector<8x128xf32>
    %2 = vector.broadcast %0 : f32 to vector<8x128xf32>
    %3 = arith.mulf %2, %1 : vector<8x128xf32>
    %c1 = arith.constant 1 : index
    %c0_2 = arith.constant 0 : index
    %4 = tpu.strided_load %arg2[%c1, %c0_2] {strides = array<i32: 4, 1>} : memref<32x128xf32, #tpu.memory_space<vmem>>, vector<8x128xf32>
    %c1_3 = arith.constant 1 : index
    %5 = memref.load %arg1[%c1_3] : memref<4xf32, #tpu.memory_space<smem>>
    %6 = vector.broadcast %5 : f32 to vector<8x128xf32>
    %7 = arith.mulf %6, %4 : vector<8x128xf32>
    %8 = arith.addf %3, %7 : vector<8x128xf32>
    %c2 = arith.constant 2 : index
    %c0_4 = arith.constant 0 : index
    %9 = tpu.strided_load %arg2[%c2, %c0_4] {strides = array<i32: 4, 1>} : memref<32x128xf32, #tpu.memory_space<vmem>>, vector<8x128xf32>
    %c2_5 = arith.constant 2 : index
    %10 = memref.load %arg1[%c2_5] : memref<4xf32, #tpu.memory_space<smem>>
    %11 = vector.broadcast %10 : f32 to vector<8x128xf32>
    %12 = arith.mulf %11, %9 : vector<8x128xf32>
    %13 = arith.addf %8, %12 : vector<8x128xf32>
    %c3 = arith.constant 3 : index
    %c0_6 = arith.constant 0 : index
    %14 = tpu.strided_load %arg2[%c3, %c0_6] {strides = array<i32: 4, 1>} : memref<32x128xf32, #tpu.memory_space<vmem>>, vector<8x128xf32>
    %c3_7 = arith.constant 3 : index
    %15 = memref.load %arg1[%c3_7] : memref<4xf32, #tpu.memory_space<smem>>
    %16 = vector.broadcast %15 : f32 to vector<8x128xf32>
    %17 = arith.mulf %16, %14 : vector<8x128xf32>
    %18 = arith.addf %13, %17 : vector<8x128xf32>
    %c0_8 = arith.constant 0 : index
    %c0_9 = arith.constant 0 : index
    %19 = vector.load %arg3[%c0_8, %c0_9] : memref<8x128xf32, #tpu.memory_space<vmem>>, vector<8x128xf32>
    tpu.vector_store %arg3[%c0_8, %c0_9], %18 {strides = array<i32>} : memref<8x128xf32, #tpu.memory_space<vmem>>, vector<8x128xf32>,
    %c0_i32 = arith.constant 0 : i32
    %20 = arith.cmpi eq, %arg0, %c0_i32 : i32
    %21 = arith.extui %20 : i1 to i32
    %c0_i32_10 = arith.constant 0 : i32
    %22 = arith.cmpi ne, %21, %c0_i32_10 : i32
    scf.if %22 {
      %c0_11 = arith.constant 0 : index
      %23 = memref.load %arg1[%c0_11] : memref<4xf32, #tpu.memory_space<smem>>
      %c28 = arith.constant 28 : index
      %c0_12 = arith.constant 0 : index
      %24 = vector.load %arg2[%c28, %c0_12] : memref<32x128xf32, #tpu.memory_space<vmem>>, vector<1x128xf32>
      %25 = vector.broadcast %23 : f32 to vector<1x128xf32>
      %26 = arith.mulf %25, %24 : vector<1x128xf32>
      %c1_13 = arith.constant 1 : index
      %27 = memref.load %arg1[%c1_13] : memref<4xf32, #tpu.memory_space<smem>>
      %c29 = arith.constant 29 : index
      %c0_14 = arith.constant 0 : index
      %28 = vector.load %arg2[%c29, %c0_14] : memref<32x128xf32, #tpu.memory_space<vmem>>, vector<1x128xf32>
      %29 = vector.broadcast %27 : f32 to vector<1x128xf32>
      %30 = arith.mulf %29, %28 : vector<1x128xf32>
      %31 = arith.addf %26, %30 : vector<1x128xf32>
      %c2_15 = arith.constant 2 : index
      %32 = memref.load %arg1[%c2_15] : memref<4xf32, #tpu.memory_space<smem>>
      %c29_16 = arith.constant 29 : index
      %c0_17 = arith.constant 0 : index
      %33 = vector.load %arg2[%c29_16, %c0_17] : memref<32x128xf32, #tpu.memory_space<vmem>>, vector<1x128xf32>
      %34 = vector.broadcast %32 : f32 to vector<1x128xf32>
      %35 = arith.mulf %34, %33 : vector<1x128xf32>
      %36 = arith.addf %31, %35 : vector<1x128xf32>
      %c3_18 = arith.constant 3 : index
      %37 = memref.load %arg1[%c3_18] : memref<4xf32, #tpu.memory_space<smem>>
      %c29_19 = arith.constant 29 : index
      %c0_20 = arith.constant 0 : index
      %38 = vector.load %arg2[%c29_19, %c0_20] : memref<32x128xf32, #tpu.memory_space<vmem>>, vector<1x128xf32>
      %39 = vector.broadcast %37 : f32 to vector<1x128xf32>
      %40 = arith.mulf %39, %38 : vector<1x128xf32>
      %41 = arith.addf %36, %40 : vector<1x128xf32>
      %c7 = arith.constant 7 : index
      %c0_21 = arith.constant 0 : index
      %42 = vector.load %arg3[%c7, %c0_21] : memref<8x128xf32, #tpu.memory_space<vmem>>, vector<1x128xf32>
      tpu.vector_store %arg3[%c7, %c0_21], %41 {strides = array<i32>} : memref<8x128xf32, #tpu.memory_space<vmem>>, vector<1x128xf32>,
    } else {
    }
    return
  }
  func.func @transform_0(%arg0: i32) -> i32 {
    %c0_i32 = arith.constant 0 : i32
    %c0_i32_0 = arith.constant 0 : i32
    return %c0_i32 : i32
  }
  func.func @transform_1(%arg0: i32) -> (i32, i32) {
    %c0_i32 = arith.constant 0 : i32
    %c0_i32_0 = arith.constant 0 : i32
    return %arg0, %c0_i32 : i32, i32
  }
  func.func @transform_2(%arg0: i32) -> (i32, i32) {
    %c0_i32 = arith.constant 0 : i32
    %c0_i32_0 = arith.constant 0 : i32
    return %arg0, %c0_i32 : i32, i32
  }
}

</mosaic_0001>

<llo_original>
// kernel: tpu_custom_call.1
$region0: #{tpu_custom_call.1}
  #allocation0 [shape = 'u32[]', space=smem, size = 0x4, offset = 0x4, fixed_abs, tag = 'smem constant byte address 0x4 - core index']
  #allocation1 [shape = 'u32[144,128]{1,0:T(1,128)}', space=vmem, size = 0x12000, scoped, tag = 'internal scratch']
  %s0 = inlined_call_operand.hbm [shape: f32[4], index: 0, kind: input, shape index: {}]
  %s1 = inlined_call_operand.hbm [shape: f32[30,128], index: 1, kind: input, shape index: {}]
  %s2 = inlined_call_operand.hbm [shape: f32[8,128], index: 2, kind: output, shape index: {}]
  %s3 = sld [smem:[#allocation0]]
  $region30: #{tpu_custom_call.1} parent=0
    _
  %s5 = ssub.s32 1, %s3
  %s6 = scalar_select 0, %s5, %s3
  $region1: #{tpu_custom_call.1} parent=0
    #allocation2 [shape = 'u8[512]{0}', space=smem, size = 0x200, scoped, tag = 'input window, operand 0, single buffered']
    #allocation3 [shape = 's32[1]{0}', space=sflag, size = 0x4, scoped, tag = 'scoped memory for tpu_custom_call.1']
    #allocation4 [shape = 's32[1]{0}', space=sflag, size = 0x4, scoped, tag = 'scoped memory for tpu_custom_call.1']
    #allocation5 [shape = 's32[1]{0}', space=sflag, size = 0x4, scoped, tag = 'scoped memory for tpu_custom_call.1']
    #allocation6 [shape = 'u8[16384]{0}', space=vmem, size = 0x4000, scoped, tag = 'input window, operand 1, single buffered']
    #allocation7 [shape = 'u8[4096]{0}', space=vmem, size = 0x1000, scoped, tag = 'output window, operand 0, single buffered']
    %7 = vsyncpa [#allocation5], 0
    %8 = vsyncpa [#allocation3], 0
    %9 = vsyncpa [#allocation4], 0
    // Predicated region
    $region2: #{tpu_custom_call.1} parent=1 // pred_check
      _
    $region3: #{tpu_custom_call.1} parent=1 // pred_check_branch
      %11 = sbr.rel (0) target = $region5
    $region4: #{tpu_custom_call.1} parent=1 // pred_region
      %s13 = ssub.s32 16, 16
      %14 = vsyncadd [#allocation5], %s13
      %17 = dma.hbm_to_smem %s0, 16, [#allocation2], [#allocation5]
    $region5: #{tpu_custom_call.1} parent=1 // pred_fallthru
      _
    // Predicated region
    $region6: #{tpu_custom_call.1} parent=1 // pred_check
      _
    $region7: #{tpu_custom_call.1} parent=1 // pred_check_branch
      %19 = sbr.rel (0) target = $region9
    $region8: #{tpu_custom_call.1} parent=1 // pred_region
      %s21 = ssub.s32 512, 512
      %22 = vsyncadd [#allocation3], %s21
      %s23 = sshll.u32 [#allocation6], 4
      %s24 = int_to_ptr.vmem [resolvable:$true] %s23
      %29 = dma.hbm_to_vmem [thread:$0]  %s1, 512, %s24, [#allocation3], 128, 128, 8
    $region9: #{tpu_custom_call.1} parent=1 // pred_fallthru
      _
    // Predicated region
    $region10: #{tpu_custom_call.1} parent=1 // pred_check
      _
    $region11: #{tpu_custom_call.1} parent=1 // pred_check_branch
      %31 = sbr.rel (0) target = $region13
    $region12: #{tpu_custom_call.1} parent=1 // pred_region
      %32 = dma.done [#allocation5], 16
    $region13: #{tpu_custom_call.1} parent=1 // pred_fallthru
      _
    // Predicated region
    $region14: #{tpu_custom_call.1} parent=1 // pred_check
      _
    $region15: #{tpu_custom_call.1} parent=1 // pred_check_branch
      %34 = sbr.rel (0) target = $region17
    $region16: #{tpu_custom_call.1} parent=1 // pred_region
      %35 = dma.done [#allocation3], 512
    $region17: #{tpu_custom_call.1} parent=1 // pred_fallthru
      _
    %36 = sfence
    %s37 = sld [smem:[#allocation2]]
    %v38 = vld [vmem:[#allocation6] ss:$4 sm:$0xff]
    %v39 = vstv %s37
    %v40 = vmul.f32 %v39, %v38
    %s41 = scalar_lea.vmem [#allocation6], 1
    %v42 = vld [vmem:[%s41] ss:$4 sm:$0xff]
    %s43 = sld [smem:[#allocation2 + $0x1]]
    %v44 = vstv %s43
    %v45 = vmul.f32 %v44, %v42
    %v46 = vadd.f32 %v40, %v45
    %s47 = scalar_lea.vmem [#allocation6], 2
    %v48 = vld [vmem:[%s47] ss:$4 sm:$0xff]
    %s49 = sld [smem:[#allocation2 + $0x2]]
    %v50 = vstv %s49
    %v51 = vmul.f32 %v50, %v48
    %v52 = vadd.f32 %v46, %v51
    %s53 = scalar_lea.vmem [#allocation6], 3
    %v54 = vld [vmem:[%s53] ss:$4 sm:$0xff]
    %s55 = sld [smem:[#allocation2 + $0x3]]
    %v56 = vstv %s55
    %v57 = vmul.f32 %v56, %v54
    %v58 = vadd.f32 %v52, %v57
    %59 = vst [vmem:[#allocation7] sm:$0xff] %v58
    %p60 = scmp.eq.s32.totalorder 0, 0
    // Predicated region
    $region18: #{tpu_custom_call.1} parent=1 // pred_check
      %p61 = pneg %p60
    $region19: #{tpu_custom_call.1} parent=1 // pred_check_branch
      %63 = sbr.rel (%p61) target = $region21
    $region20: #{tpu_custom_call.1} parent=1 // pred_region
      %s64 = sld [smem:[#allocation2]]
      %v65 = vld [vmem:[#allocation6 + $0x1c] sm:$0x1]
      %v66 = vstv %s64
      %v67 = vmul.f32 %v66, %v65
      %s68 = sld [smem:[#allocation2 + $0x1]]
      %v69 = vld [vmem:[#allocation6 + $0x1d] sm:$0x1]
      %v70 = vstv %s68
      %v71 = vmul.f32 %v70, %v69
      %v72 = vadd.f32 %v67, %v71
      %s73 = sld [smem:[#allocation2 + $0x2]]
      %v74 = vstv %s73
      %v75 = vmul.f32 %v74, %v69
      %v76 = vadd.f32 %v72, %v75
      %s77 = sld [smem:[#allocation2 + $0x3]]
      %v78 = vstv %s77
      %v79 = vmul.f32 %v78, %v69
      %v80 = vadd.f32 %v76, %v79
      %81 = vst [vmem:[#allocation7 + $0x7] sm:$0x1] %v80
    $region21: #{tpu_custom_call.1} parent=1 // pred_fallthru
      _
    // Predicated region
    $region22: #{tpu_custom_call.1} parent=1 // pred_check
      _
    $region23: #{tpu_custom_call.1} parent=1 // pred_check_branch
      %83 = sbr.rel (0) target = $region25
    $region24: #{tpu_custom_call.1} parent=1 // pred_region
      %s85 = ssub.s32 128, 128
      %86 = vsyncadd [#allocation4], %s85
      %s88 = sshll.u32 [#allocation7], 4
      %s89 = int_to_ptr.vmem [resolvable:$true] %s88
      %91 = dma.vmem_to_hbm [thread:$0]  %s89, 128, %s2, [#allocation4]
    $region25: #{tpu_custom_call.1} parent=1 // pred_fallthru
      _
    // Predicated region
    $region26: #{tpu_custom_call.1} parent=1 // pred_check
      _
    $region27: #{tpu_custom_call.1} parent=1 // pred_check_branch
      %93 = sbr.rel (0) target = $region29
    $region28: #{tpu_custom_call.1} parent=1 // pred_region
      %94 = dma.done [#allocation4], 128
    $region29: #{tpu_custom_call.1} parent=1 // pred_fallthru
      _
    %95 = vsyncpa [#allocation3], 1
    %96 = vsyncpa [#allocation4], 1
    %97 = vsyncpa [#allocation5], 1

</llo_original>
